<compile_context>
chip_gen: v7x
topology: tpu7x:2x2x1
jax: 0.10.0
libtpu: 0.0.40
codegen_flags: <defaults>
</compile_context>

<pallas_src>
import jax
import jax.numpy as jnp
from jax.experimental import pallas as pl
from jax.experimental.pallas import tpu as pltpu


def qmodel_kernel(a_t_ref, p_t_ref, w1a_ref, w1p_ref, b1_ref, w2_ref, b2_ref, o_ref):
    """One batch tile of the QModel forward pass, batch-on-lanes.

    a_t, p_t : (n, TB)        transposed input halves (batch on the lane axis)
    w1a, w1p : (hidden, n)    first-layer weight, torch-native (out, in), pre-split
    b1       : (hidden, 1)    first-layer bias column (broadcast over lanes)
    w2       : (1, hidden)    second-layer weight, torch-native (out=1, in)
    b2       : (1,)  (SMEM)   second-layer bias, scalar
    o        : (1, TB)        lane-dense output (batch on the lane axis)
    """
    # Layer 1: h^T = W1a @ a^T + W1p @ p^T + b1   -> (hidden, TB), fully lane-packed.
    h = (jnp.dot(w1a_ref[...], a_t_ref[...], preferred_element_type=jnp.float32)
         + jnp.dot(w1p_ref[...], p_t_ref[...], preferred_element_type=jnp.float32)
         + b1_ref[...])
    h = jnp.maximum(h, 0.0)  # ReLU on dense (hidden, TB) vregs

    # Layer 2: out^T = W2 @ h^T  -> (1, TB).  Plain NN contraction over the hidden
    # (sublane/K) axis: no transpose needed, batch stays on lanes -> dense stores.
    out = jnp.dot(w2_ref[...], h, preferred_element_type=jnp.float32)
    o_ref[...] = (out + b2_ref[0]).astype(o_ref.dtype)  # b2: scalar add from SMEM


_TB_MAX = 2048  # lane-dense tile cap: (16, 2048) f32 block = 128 KiB per buffer


def _round_up(x, m):
    return ((x + m - 1) // m) * m


def _choose_tile(B):
    """Return (tile, grid) for the 1-D batch-on-lanes grid."""
    if B < 256:
        # Single block covering the full (unpadded) lane extent; at these sizes the
        # call is launch-bound anyway, so no pipelining overhead is paid.
        return B, 1
    # Cap the tile at ceil(B/2) (rounded to a 128-lane multiple) so there are always
    # >= 2 grid steps for the "parallel" axis to shard across v7x's two TensorCores.
    tb = min(_TB_MAX, _round_up(pl.cdiv(B, 2), 128))
    return tb, pl.cdiv(B, tb)


def qmodel_forward(actions, probabilities, params):
    """actions, probabilities: (B, tree_height - 1) float32  ->  (B, 1) float32."""
    w1a, w1p, b1_col, w2_row, b2 = params
    B, n = actions.shape
    hidden = w1a.shape[0]

    # Batch-on-lanes: transpose once in the wrapper (ideally the upstream producer
    # emits (n, B) directly and this becomes a no-op).
    a_t = actions.T          # (n, B)
    p_t = probabilities.T    # (n, B)

    tb, grid_n = _choose_tile(B)
    Bp = tb * grid_n
    if Bp != B:
        pad = Bp - B
        a_t = jnp.pad(a_t, ((0, 0), (0, pad)))
        p_t = jnp.pad(p_t, ((0, 0), (0, pad)))

    # Grid-invariant (resident) operands: weights / biases.
    inv = lambda shape: pl.BlockSpec(shape, lambda i: (0, 0))

    # Advisory cost hint so XLA does not mis-schedule surrounding ops around this call.
    flops = 2 * Bp * (2 * n * hidden + hidden)
    bytes_accessed = (2 * Bp * n + Bp) * 4 + (2 * hidden * n + hidden + hidden + 1) * 4

    out_1b = pl.pallas_call(
        qmodel_kernel,
        out_shape=jax.ShapeDtypeStruct((1, Bp), jnp.float32),
        grid=(grid_n,),
        in_specs=[
            pl.BlockSpec((n, tb), lambda i: (0, i)),             # actions^T tile
            pl.BlockSpec((n, tb), lambda i: (0, i)),             # probabilities^T tile
            inv((hidden, n)),                                    # w1[:, :n]  (out, in)
            inv((hidden, n)),                                    # w1[:, n:]  (out, in)
            inv((hidden, 1)),                                    # b1 column
            inv((1, hidden)),                                    # w2 row (torch layout)
            pl.BlockSpec(memory_space=pltpu.MemorySpace.SMEM),   # b2 scalar in SMEM
        ],
        out_specs=pl.BlockSpec((1, tb), lambda i: (0, i)),       # lane-dense output
        compiler_params=pltpu.CompilerParams(
            dimension_semantics=("parallel",)),                  # megacore on v7x
        cost_estimate=pl.CostEstimate(
            flops=flops, transcendentals=0, bytes_accessed=bytes_accessed),
    )(a_t, p_t, w1a, w1p, b1_col, w2_row, b2)

    # (1, Bp) -> drop padding -> (B, 1): contiguous row-major reshape, preserving the
    # torch module's output shape.
    return out_1b[:, :B].reshape(B, 1)


def init_params(tree_height, key):
    """Mirror nn.Linear's default U(-1/sqrt(fan_in), 1/sqrt(fan_in)) init.

    Both weights are kept in torch-native (out, in) layout: that is exactly what the
    batch-on-lanes kernel needs, so no transpose ever happens.
    """
    n = tree_height - 1
    h_size = 2 * n
    hidden = h_size // 2
    k1, k2, k3, k4 = jax.random.split(key, 4)
    bound1 = 1.0 / (h_size ** 0.5)
    bound2 = 1.0 / (hidden ** 0.5)
    w1 = jax.random.uniform(k1, (hidden, h_size), jnp.float32, -bound1, bound1)
    b1 = jax.random.uniform(k2, (hidden,), jnp.float32, -bound1, bound1)
    w2 = jax.random.uniform(k3, (1, hidden), jnp.float32, -bound2, bound2)
    b2 = jax.random.uniform(k4, (1,), jnp.float32, -bound2, bound2)
    # Split W1 along the "in" axis once so the kernel never sees the torch.cat.
    w1a = w1[:, :n]                 # multiplies actions^T
    w1p = w1[:, n:]                 # multiplies probabilities^T
    b1_col = b1.reshape(hidden, 1)  # column bias for the (hidden, TB) layout
    return w1a, w1p, b1_col, w2, b2


def _reference(actions, probabilities, params):
    """Pure-JAX reference, identical math to the torch module's forward."""
    w1a, w1p, b1_col, w2_row, b2 = params
    x = jnp.concatenate([actions, probabilities], axis=1)   # torch.cat((a, p), 1)
    w1 = jnp.concatenate([w1a, w1p], axis=1)                 # (hidden, 2n), torch layout
    h = jnp.maximum(x @ w1.T + b1_col.T, 0.0)
    return h @ w2_row.T + b2


if __name__ == "__main__":
    tree_height = 17           # -> n = 16, h_size = 32, hidden = 16
    n = tree_height - 1

    key = jax.random.PRNGKey(0)
    kp, ka, kpr = jax.random.split(key, 3)
    params = init_params(tree_height, kp)

    # --- shipped small batch (single-block, launch-bound regime) ---
    batch = 8
    actions = (2.0 * jax.random.bernoulli(ka, 0.5, (batch, n)) - 1.0).astype(jnp.float32)
    probabilities = jax.random.uniform(kpr, (batch, n), dtype=jnp.float32)

    out = jax.block_until_ready(qmodel_forward(actions, probabilities, params))
    ref = _reference(actions, probabilities, params)
    assert out.shape == (batch, 1)
    assert jnp.allclose(out, ref, atol=1e-5, rtol=1e-5)

    # --- larger, non-tile-multiple batch (exercises the cdiv grid + lane padding path) ---
    batch2 = 384
    ka2, kp2 = jax.random.split(jax.random.PRNGKey(1))
    actions2 = (2.0 * jax.random.bernoulli(ka2, 0.5, (batch2, n)) - 1.0).astype(jnp.float32)
    probabilities2 = jax.random.uniform(kp2, (batch2, n), dtype=jnp.float32)

    out2 = jax.block_until_ready(qmodel_forward(actions2, probabilities2, params))
    ref2 = _reference(actions2, probabilities2, params)
    assert out2.shape == (batch2, 1)
    assert jnp.allclose(out2, ref2, atol=1e-5, rtol=1e-5)

    print("KERNEL_OK")
</pallas_src>

<mosaic_0001>
module attributes {stable_mosaic.version = 11 : i64} {
  func.func @qmodel_kernel(%arg0: i32, %arg1: memref<16x8xf32, #tpu.memory_space<vmem>>, %arg2: memref<16x8xf32, #tpu.memory_space<vmem>>, %arg3: memref<16x16xf32, #tpu.memory_space<vmem>>, %arg4: memref<16x16xf32, #tpu.memory_space<vmem>>, %arg5: memref<16x1xf32, #tpu.memory_space<vmem>>, %arg6: memref<1x16xf32, #tpu.memory_space<vmem>>, %arg7: memref<1xf32, #tpu.memory_space<smem>>, %arg8: memref<1x8xf32, #tpu.memory_space<vmem>>) attributes {dimension_semantics = [#tpu.dimension_semantics<parallel>], iteration_bounds = array<i64: 1>, scalar_prefetch = 0 : i64, scratch_operands = 0 : i64, tpu.core_type = #tpu.core_type<tc>, window_params = [{transform_indices = @transform_0, window_bounds = array<i64: 16, 8>}, {transform_indices = @transform_1, window_bounds = array<i64: 16, 8>}, {pipeline_mode = #tpu.pipeline_mode<synchronous>, transform_indices = @transform_2, window_bounds = array<i64: 16, 16>}, {pipeline_mode = #tpu.pipeline_mode<synchronous>, transform_indices = @transform_3, window_bounds = array<i64: 16, 16>}, {pipeline_mode = #tpu.pipeline_mode<synchronous>, transform_indices = @transform_4, window_bounds = array<i64: 16, 1>}, {pipeline_mode = #tpu.pipeline_mode<synchronous>, transform_indices = @transform_5, window_bounds = array<i64: 1, 16>}, {transform_indices = @transform_6, window_bounds = array<i64: 1>}, {transform_indices = @transform_7, window_bounds = array<i64: 1, 8>}]} {
    %c0 = arith.constant 0 : index
    %c0_0 = arith.constant 0 : index
    %0 = vector.load %arg3[%c0, %c0_0] : memref<16x16xf32, #tpu.memory_space<vmem>>, vector<16x16xf32>
    %c0_1 = arith.constant 0 : index
    %c0_2 = arith.constant 0 : index
    %1 = vector.load %arg1[%c0_1, %c0_2] : memref<16x8xf32, #tpu.memory_space<vmem>>, vector<16x8xf32>
    %cst = arith.constant dense<0.000000e+00> : vector<16x8xf32>
    %2 = tpu.matmul %0, %1, %cst {dimension_numbers = #tpu.dot_dimension_numbers<[1], [0], [0], [1], [0, 0, 1, 1], [], []>} : vector<16x16xf32>, vector<16x8xf32>, vector<16x8xf32> -> vector<16x8xf32>
    %c0_3 = arith.constant 0 : index
    %c0_4 = arith.constant 0 : index
    %3 = vector.load %arg4[%c0_3, %c0_4] : memref<16x16xf32, #tpu.memory_space<vmem>>, vector<16x16xf32>
    %c0_5 = arith.constant 0 : index
    %c0_6 = arith.constant 0 : index
    %4 = vector.load %arg2[%c0_5, %c0_6] : memref<16x8xf32, #tpu.memory_space<vmem>>, vector<16x8xf32>
    %cst_7 = arith.constant dense<0.000000e+00> : vector<16x8xf32>
    %5 = tpu.matmul %3, %4, %cst_7 {dimension_numbers = #tpu.dot_dimension_numbers<[1], [0], [0], [1], [0, 0, 1, 1], [], []>} : vector<16x16xf32>, vector<16x8xf32>, vector<16x8xf32> -> vector<16x8xf32>
    %6 = arith.addf %2, %5 : vector<16x8xf32>
    %c0_8 = arith.constant 0 : index
    %c0_9 = arith.constant 0 : index
    %7 = vector.load %arg5[%c0_8, %c0_9] : memref<16x1xf32, #tpu.memory_space<vmem>>, vector<16x1xf32>
    %8 = vector.broadcast %7 : vector<16x1xf32> to vector<16x8xf32>
    %9 = arith.addf %6, %8 : vector<16x8xf32>
    %cst_10 = arith.constant 0.000000e+00 : f32
    %10 = vector.broadcast %cst_10 : f32 to vector<16x8xf32>
    %11 = arith.maximumf %9, %10 : vector<16x8xf32>
    %c0_11 = arith.constant 0 : index
    %c0_12 = arith.constant 0 : index
    %12 = vector.load %arg6[%c0_11, %c0_12] : memref<1x16xf32, #tpu.memory_space<vmem>>, vector<1x16xf32>
    %cst_13 = arith.constant dense<0.000000e+00> : vector<1x8xf32>
    %13 = tpu.matmul %12, %11, %cst_13 {dimension_numbers = #tpu.dot_dimension_numbers<[1], [0], [0], [1], [0, 0, 1, 1], [], []>} : vector<1x16xf32>, vector<16x8xf32>, vector<1x8xf32> -> vector<1x8xf32>
    %c0_14 = arith.constant 0 : index
    %14 = memref.load %arg7[%c0_14] : memref<1xf32, #tpu.memory_space<smem>>
    %15 = vector.broadcast %14 : f32 to vector<1x8xf32>
    %16 = arith.addf %13, %15 : vector<1x8xf32>
    %c0_15 = arith.constant 0 : index
    %c0_16 = arith.constant 0 : index
    %17 = vector.load %arg8[%c0_15, %c0_16] : memref<1x8xf32, #tpu.memory_space<vmem>>, vector<1x8xf32>
    tpu.vector_store %arg8[%c0_15, %c0_16], %16 {strides = array<i32>} : memref<1x8xf32, #tpu.memory_space<vmem>>, vector<1x8xf32>,
    return
  }
  func.func @transform_0(%arg0: i32) -> (i32, i32) {
    %c0_i32 = arith.constant 0 : i32
    %c0_i32_0 = arith.constant 0 : i32
    return %c0_i32, %arg0 : i32, i32
  }
  func.func @transform_1(%arg0: i32) -> (i32, i32) {
    %c0_i32 = arith.constant 0 : i32
    %c0_i32_0 = arith.constant 0 : i32
    return %c0_i32, %arg0 : i32, i32
  }
  func.func @transform_2(%arg0: i32) -> (i32, i32) {
    %c0_i32 = arith.constant 0 : i32
    %c0_i32_0 = arith.constant 0 : i32
    %c0_i32_1 = arith.constant 0 : i32
    return %c0_i32, %c0_i32_0 : i32, i32
  }
  func.func @transform_3(%arg0: i32) -> (i32, i32) {
    %c0_i32 = arith.constant 0 : i32
    %c0_i32_0 = arith.constant 0 : i32
    %c0_i32_1 = arith.constant 0 : i32
    return %c0_i32, %c0_i32_0 : i32, i32
  }
  func.func @transform_4(%arg0: i32) -> (i32, i32) {
    %c0_i32 = arith.constant 0 : i32
    %c0_i32_0 = arith.constant 0 : i32
    %c0_i32_1 = arith.constant 0 : i32
    return %c0_i32, %c0_i32_0 : i32, i32
  }
  func.func @transform_5(%arg0: i32) -> (i32, i32) {
    %c0_i32 = arith.constant 0 : i32
    %c0_i32_0 = arith.constant 0 : i32
    %c0_i32_1 = arith.constant 0 : i32
    return %c0_i32, %c0_i32_0 : i32, i32
  }
  func.func @transform_6(%arg0: i32) -> i32 {
    %c0_i32 = arith.constant 0 : i32
    %c0_i32_0 = arith.constant 0 : i32
    return %c0_i32 : i32
  }
  func.func @transform_7(%arg0: i32) -> (i32, i32) {
    %c0_i32 = arith.constant 0 : i32
    %c0_i32_0 = arith.constant 0 : i32
    return %c0_i32, %arg0 : i32, i32
  }
}

</mosaic_0001>

<llo_original>
// kernel: tpu_custom_call.1
$region0: #{tpu_custom_call.1}
  #allocation0 [shape = 'u32[]', space=smem, size = 0x4, offset = 0x4, fixed_abs, tag = 'smem constant byte address 0x4 - core index']
  #allocation1 [shape = 'u32[144,128]{1,0:T(1,128)}', space=vmem, size = 0x12000, scoped, tag = 'internal scratch']
  #allocation2 [shape = 'f32[1]{0:T(128)S(6)}', space=smem, size = 0x200, scoped, tag = 'scoped memory for tpu_custom_call.1']
  %s0 = inlined_call_operand.vmem [shape: f32[16,8], index: 0, kind: input, shape index: {}]
  %s1 = inlined_call_operand.vmem [shape: f32[16,8], index: 1, kind: input, shape index: {}]
  %s2 = inlined_call_operand.vmem [shape: f32[16,16], index: 2, kind: input, shape index: {}]
  %s3 = inlined_call_operand.vmem [shape: f32[16,16], index: 3, kind: input, shape index: {}]
  %s4 = inlined_call_operand.vmem [shape: f32[16,1], index: 4, kind: input, shape index: {}]
  %s5 = inlined_call_operand.vmem [shape: f32[1,16], index: 5, kind: input, shape index: {}]
  %s6 = inlined_call_operand.<no memory space> [shape: f32[1], index: 6, kind: input, shape index: {}]
  %s7 = inlined_call_operand.hbm [shape: f32[1,8], index: 7, kind: output, shape index: {}]
  %s8 = sld [smem:[#allocation0]]
  $region38: #{tpu_custom_call.1} parent=0
    _
  %s10 = ssub.s32 1, %s8
  %s11 = scalar_select 0, %s10, %s8
  %12 = sst [smem:[#allocation2]] %s6
  $region1: #{tpu_custom_call.1} parent=0
    #allocation3 [shape = 'u8[512]{0}', space=vmem, size = 0x400, scoped, tag = 'output window, operand 0, single buffered']
    #allocation4 [shape = 's32[1]{0}', space=sflag, size = 0x4, scoped, tag = 'scoped memory for tpu_custom_call.1']
    %13 = vsyncpa [#allocation4], 0
    // Predicated region
    $region2: #{tpu_custom_call.1} parent=1 // pred_check
      _
    $region3: #{tpu_custom_call.1} parent=1 // pred_check_branch
      %15 = sbr.rel (0) target = $region5
    $region4: #{tpu_custom_call.1} parent=1 // pred_region
      _
    $region5: #{tpu_custom_call.1} parent=1 // pred_fallthru
      _
    // Predicated region
    $region6: #{tpu_custom_call.1} parent=1 // pred_check
      _
    $region7: #{tpu_custom_call.1} parent=1 // pred_check_branch
      %17 = sbr.rel (0) target = $region9
    $region8: #{tpu_custom_call.1} parent=1 // pred_region
      _
    $region9: #{tpu_custom_call.1} parent=1 // pred_fallthru
      _
    // Predicated region
    $region10: #{tpu_custom_call.1} parent=1 // pred_check
      _
    $region11: #{tpu_custom_call.1} parent=1 // pred_check_branch
      %19 = sbr.rel (0) target = $region13
    $region12: #{tpu_custom_call.1} parent=1 // pred_region
      _
    $region13: #{tpu_custom_call.1} parent=1 // pred_fallthru
      _
    // Predicated region
    $region14: #{tpu_custom_call.1} parent=1 // pred_check
      _
    $region15: #{tpu_custom_call.1} parent=1 // pred_check_branch
      %21 = sbr.rel (0) target = $region17
    $region16: #{tpu_custom_call.1} parent=1 // pred_region
      _
    $region17: #{tpu_custom_call.1} parent=1 // pred_fallthru
      _
    // Predicated region
    $region18: #{tpu_custom_call.1} parent=1 // pred_check
      _
    $region19: #{tpu_custom_call.1} parent=1 // pred_check_branch
      %23 = sbr.rel (0) target = $region21
    $region20: #{tpu_custom_call.1} parent=1 // pred_region
      _
    $region21: #{tpu_custom_call.1} parent=1 // pred_fallthru
      _
    // Predicated region
    $region22: #{tpu_custom_call.1} parent=1 // pred_check
      _
    $region23: #{tpu_custom_call.1} parent=1 // pred_check_branch
      %25 = sbr.rel (0) target = $region25
    $region24: #{tpu_custom_call.1} parent=1 // pred_region
      _
    $region25: #{tpu_custom_call.1} parent=1 // pred_fallthru
      _
    // Predicated region
    $region26: #{tpu_custom_call.1} parent=1 // pred_check
      _
    $region27: #{tpu_custom_call.1} parent=1 // pred_check_branch
      %27 = sbr.rel (0) target = $region29
    $region28: #{tpu_custom_call.1} parent=1 // pred_region
      _
    $region29: #{tpu_custom_call.1} parent=1 // pred_fallthru
      _
    %v28 = vld [vmem:[%s2] sm:$0xff]
    %v29 = vld [vmem:[%s2 + $0x8] sm:$0xff]
    %v30 = vld [vmem:[%s0] sm:$0xff]
    %v31 = vld [vmem:[%s0 + $0x8] sm:$0xff]
    %v32 = vld [vmem:[%s3] sm:$0xff]
    %v33 = vld [vmem:[%s3 + $0x8] sm:$0xff]
    %v34 = vld [vmem:[%s1] sm:$0xff]
    %v35 = vld [vmem:[%s1 + $0x8] sm:$0xff]
    %vm36 = vcmask 130048
    %v38 = vsel %vm36, %v32, 0
    %v41 = vsel %vm36, %v33, 0
    %43 = vmatprep.subr.mxu0 0.0
    %44 = vmatpush1.msra.mxu0 %v34
    %45 = vmatprep.subr.mxu0 0.0
    %46 = vmatpush1.msra.mxu0 %v35
    %47 = vmatprep.subr.mxu0 0.0
    %48 = vmatpush1.msra.mxu0 0.0
    %49 = vmatprep.subr.mxu0 0.0
    %50 = vmatpush1.msra.mxu0 0.0
    %51 = vmatprep.subr.mxu0 0.0
    %52 = vmatpush1.msra.mxu0 0.0
    %53 = vmatprep.subr.mxu0 0.0
    %54 = vmatpush1.msra.mxu0 0.0
    %55 = vmatprep.subr.mxu0 0.0
    %56 = vmatpush1.msra.mxu0 0.0
    %57 = vmatprep.subr.mxu0 0.0
    %58 = vmatpush1.msra.mxu0 0.0
    %59 = vmatprep.subr.mxu0 0.0
    %60 = vmatpush1.msra.mxu0 0.0
    %61 = vmatprep.subr.mxu0 0.0
    %62 = vmatpush1.msra.mxu0 0.0
    %63 = vmatprep.subr.mxu0 0.0
    %64 = vmatpush1.msra.mxu0 0.0
    %65 = vmatprep.subr.mxu0 0.0
    %66 = vmatpush1.msra.mxu0 0.0
    %67 = vmatprep.subr.mxu0 0.0
    %68 = vmatpush1.msra.mxu0 0.0
    %69 = vmatprep.subr.mxu0 0.0
    %70 = vmatpush1.msra.mxu0 0.0
    %71 = vmatprep.subr.mxu0 0.0
    %72 = vmatpush1.msra.mxu0 0.0
    %73 = vmatprep.subr.mxu0 0.0
    %74 = vmatpush1.msra.mxu0 0.0
    %75 = vmatprep.subr.mxu0 0.0
    %76 = vmatpush1.msra.mxu0 0.0
    %77 = vmatprep.subr.mxu0 0.0
    %78 = vmatpush1.msra.mxu0 0.0
    %79 = vmatprep.subr.mxu0 0.0
    %80 = vmatpush1.msra.mxu0 0.0
    %81 = vmatprep.subr.mxu0 0.0
    %82 = vmatpush1.msra.mxu0 0.0
    %83 = vmatprep.subr.mxu0 0.0
    %84 = vmatpush1.msra.mxu0 0.0
    %85 = vmatprep.subr.mxu0 0.0
    %86 = vmatpush1.msra.mxu0 0.0
    %87 = vmatprep.subr.mxu0 0.0
    %88 = vmatpush1.msra.mxu0 0.0
    %89 = vmatprep.subr.mxu0 0.0
    %90 = vmatpush1.msra.mxu0 0.0
    %91 = vmatprep.subr.mxu0 0.0
    %92 = vmatpush1.msra.mxu0 0.0
    %93 = vmatprep.subr.mxu0 0.0
    %94 = vmatpush1.msra.mxu0 0.0
    %95 = vmatprep.subr.mxu0 0.0
    %96 = vmatpush1.msra.mxu0 0.0
    %97 = vmatprep.subr.mxu0 0.0
    %98 = vmatpush1.msra.mxu0 0.0
    %99 = vmatprep.subr.mxu0 0.0
    %100 = vmatpush1.msra.mxu0 0.0
    %101 = vmatprep.subr.mxu0 0.0
    %102 = vmatpush1.msra.mxu0 0.0
    %103 = vmatprep.subr.mxu0 0.0
    %104 = vmatpush1.msra.mxu0 0.0
    %105 = vmatprep.subr.mxu0 0.0
    %106 = vmatpush1.msra.mxu0 0.0
    %107 = vmatprep.mubr.f32.mxu0 0.0
    %108 = vmatmul.mubr.f32.gmra.mrb[0].mxu0 %v38
    %v109 = vpop.f32.mrb[0].mxu0
    %v110 = vadd.f32 0.0, %v109
    %v111 = vpop.f32.mrb[0].mxu0
    %112 = vmatprep.mubr.f32.mxu0 0.0
    %113 = vmatmul.mubr.f32.gmra.mrb[0].mxu0 %v41
    %v114 = vpop.f32.mrb[0].mxu0
    %v115 = vadd.f32 0.0, %v114
    %v116 = vpop.f32.mrb[0].mxu0
    %117 = vdwg.mxu0
    %v119 = vsel %vm36, %v28, 0
    %v122 = vsel %vm36, %v29, 0
    %124 = vmatprep.subr.mxu0 0.0
    %125 = vmatpush1.msra.mxu0 %v30
    %126 = vmatprep.subr.mxu0 0.0
    %127 = vmatpush1.msra.mxu0 %v31
    %128 = vmatprep.subr.mxu0 0.0
    %129 = vmatpush1.msra.mxu0 0.0
    %130 = vmatprep.subr.mxu0 0.0
    %131 = vmatpush1.msra.mxu0 0.0
    %132 = vmatprep.subr.mxu0 0.0
    %133 = vmatpush1.msra.mxu0 0.0
    %134 = vmatprep.subr.mxu0 0.0
    %135 = vmatpush1.msra.mxu0 0.0
    %136 = vmatprep.subr.mxu0 0.0
    %137 = vmatpush1.msra.mxu0 0.0
    %138 = vmatprep.subr.mxu0 0.0
    %139 = vmatpush1.msra.mxu0 0.0
    %140 = vmatprep.subr.mxu0 0.0
    %141 = vmatpush1.msra.mxu0 0.0
    %142 = vmatprep.subr.mxu0 0.0
    %143 = vmatpush1.msra.mxu0 0.0
    %144 = vmatprep.subr.mxu0 0.0
    %145 = vmatpush1.msra.mxu0 0.0
    %146 = vmatprep.subr.mxu0 0.0
    %147 = vmatpush1.msra.mxu0 0.0
    %148 = vmatprep.subr.mxu0 0.0
    %149 = vmatpush1.msra.mxu0 0.0
    %150 = vmatprep.subr.mxu0 0.0
    %151 = vmatpush1.msra.mxu0 0.0
    %152 = vmatprep.subr.mxu0 0.0
    %153 = vmatpush1.msra.mxu0 0.0
    %154 = vmatprep.subr.mxu0 0.0
    %155 = vmatpush1.msra.mxu0 0.0
    %156 = vmatprep.subr.mxu0 0.0
    %157 = vmatpush1.msra.mxu0 0.0
    %158 = vmatprep.subr.mxu0 0.0
    %159 = vmatpush1.msra.mxu0 0.0
    %160 = vmatprep.subr.mxu0 0.0
    %161 = vmatpush1.msra.mxu0 0.0
    %162 = vmatprep.subr.mxu0 0.0
    %163 = vmatpush1.msra.mxu0 0.0
    %164 = vmatprep.subr.mxu0 0.0
    %165 = vmatpush1.msra.mxu0 0.0
    %166 = vmatprep.subr.mxu0 0.0
    %167 = vmatpush1.msra.mxu0 0.0
    %168 = vmatprep.subr.mxu0 0.0
    %169 = vmatpush1.msra.mxu0 0.0
    %170 = vmatprep.subr.mxu0 0.0
    %171 = vmatpush1.msra.mxu0 0.0
    %172 = vmatprep.subr.mxu0 0.0
    %173 = vmatpush1.msra.mxu0 0.0
    %174 = vmatprep.subr.mxu0 0.0
    %175 = vmatpush1.msra.mxu0 0.0
    %176 = vmatprep.subr.mxu0 0.0
    %177 = vmatpush1.msra.mxu0 0.0
    %178 = vmatprep.subr.mxu0 0.0
    %179 = vmatpush1.msra.mxu0 0.0
    %180 = vmatprep.subr.mxu0 0.0
    %181 = vmatpush1.msra.mxu0 0.0
    %182 = vmatprep.subr.mxu0 0.0
    %183 = vmatpush1.msra.mxu0 0.0
    %184 = vmatprep.subr.mxu0 0.0
    %185 = vmatpush1.msra.mxu0 0.0
    %186 = vmatprep.subr.mxu0 0.0
    %187 = vmatpush1.msra.mxu0 0.0
    %188 = vmatprep.mubr.f32.mxu0 0.0
    %189 = vmatmul.mubr.f32.gmra.mrb[0].mxu0 %v119
    %v190 = vpop.f32.mrb[0].mxu0
    %v191 = vadd.f32 %v110, %v190
    %v192 = vpop.f32.mrb[0].mxu0
    %193 = vmatprep.mubr.f32.mxu0 0.0
    %194 = vmatmul.mubr.f32.gmra.mrb[0].mxu0 %v122
    %v195 = vpop.f32.mrb[0].mxu0
    %v196 = vadd.f32 %v115, %v195
    %v197 = vpop.f32.mrb[0].mxu0
    %198 = vdwg.mxu0
    %v199 = vld [vmem:[%s4] sm:$0xff]
    %v200 = vld [vmem:[%s4 + $0x8] sm:$0xff]
    %202 = vset.pattern.permute.xlu0 0
    %203 = vperm.xlu0 %202, %v199
    %v204 = vpop.permute.xlu0 %203
    %207 = vset.pattern.permute.xlu0 0
    %208 = vperm.xlu0 %207, %v200
    %v209 = vpop.permute.xlu0 %208
    %v211 = vadd.f32 %v191, %v204
    %v212 = vadd.f32 %v196, %v209
    %v213 = vmax.f32 %v211, 0.0
    %v214 = vmax.f32 %v212, 0.0
    %v215 = vld [vmem:[%s5] sm:$0x1]
    %s216 = sld [smem:[#allocation2]]
    %v217 = vstv %s216
    %v219 = vsel %vm36, %v215, 0
    %221 = vmatprep.subr.mxu0 0.0
    %222 = vmatpush1.msra.mxu0 %v213
    %223 = vmatprep.subr.mxu0 0.0
    %224 = vmatpush1.msra.mxu0 %v214
    %225 = vmatprep.subr.mxu0 0.0
    %226 = vmatpush1.msra.mxu0 0.0
    %227 = vmatprep.subr.mxu0 0.0
    %228 = vmatpush1.msra.mxu0 0.0
    %229 = vmatprep.subr.mxu0 0.0
    %230 = vmatpush1.msra.mxu0 0.0
    %231 = vmatprep.subr.mxu0 0.0
    %232 = vmatpush1.msra.mxu0 0.0
    %233 = vmatprep.subr.mxu0 0.0
    %234 = vmatpush1.msra.mxu0 0.0
    %235 = vmatprep.subr.mxu0 0.0
    %236 = vmatpush1.msra.mxu0 0.0
    %237 = vmatprep.subr.mxu0 0.0
    %238 = vmatpush1.msra.mxu0 0.0
    %239 = vmatprep.subr.mxu0 0.0
    %240 = vmatpush1.msra.mxu0 0.0
    %241 = vmatprep.subr.mxu0 0.0
    %242 = vmatpush1.msra.mxu0 0.0
    %243 = vmatprep.subr.mxu0 0.0
    %244 = vmatpush1.msra.mxu0 0.0
    %245 = vmatprep.subr.mxu0 0.0
    %246 = vmatpush1.msra.mxu0 0.0
    %247 = vmatprep.subr.mxu0 0.0
    %248 = vmatpush1.msra.mxu0 0.0
    %249 = vmatprep.subr.mxu0 0.0
    %250 = vmatpush1.msra.mxu0 0.0
    %251 = vmatprep.subr.mxu0 0.0
    %252 = vmatpush1.msra.mxu0 0.0
    %253 = vmatprep.subr.mxu0 0.0
    %254 = vmatpush1.msra.mxu0 0.0
    %255 = vmatprep.subr.mxu0 0.0
    %256 = vmatpush1.msra.mxu0 0.0
    %257 = vmatprep.subr.mxu0 0.0
    %258 = vmatpush1.msra.mxu0 0.0
    %259 = vmatprep.subr.mxu0 0.0
    %260 = vmatpush1.msra.mxu0 0.0
    %261 = vmatprep.subr.mxu0 0.0
    %262 = vmatpush1.msra.mxu0 0.0
    %263 = vmatprep.subr.mxu0 0.0
    %264 = vmatpush1.msra.mxu0 0.0
    %265 = vmatprep.subr.mxu0 0.0
    %266 = vmatpush1.msra.mxu0 0.0
    %267 = vmatprep.subr.mxu0 0.0
    %268 = vmatpush1.msra.mxu0 0.0
    %269 = vmatprep.subr.mxu0 0.0
    %270 = vmatpush1.msra.mxu0 0.0
    %271 = vmatprep.subr.mxu0 0.0
    %272 = vmatpush1.msra.mxu0 0.0
    %273 = vmatprep.subr.mxu0 0.0
    %274 = vmatpush1.msra.mxu0 0.0
    %275 = vmatprep.subr.mxu0 0.0
    %276 = vmatpush1.msra.mxu0 0.0
    %277 = vmatprep.subr.mxu0 0.0
    %278 = vmatpush1.msra.mxu0 0.0
    %279 = vmatprep.subr.mxu0 0.0
    %280 = vmatpush1.msra.mxu0 0.0
    %281 = vmatprep.subr.mxu0 0.0
    %282 = vmatpush1.msra.mxu0 0.0
    %283 = vmatprep.subr.mxu0 0.0
    %284 = vmatpush1.msra.mxu0 0.0
    %285 = vmatprep.mubr.f32.mxu0 0.0
    %286 = vmatmul.mubr.f32.gmra.mrb[0].mxu0 %v219
    %v287 = vpop.f32.mrb[0].mxu0
    %v288 = vadd.f32 %v217, %v287
    %v289 = vpop.f32.mrb[0].mxu0
    %290 = vdwg.mxu0
    %vm291 = vcmask 57344
    %292 = vst.msk [vmem:[#allocation3] sm:$0x1] %vm291, %v288
    // Predicated region
    $region30: #{tpu_custom_call.1} parent=1 // pred_check
      _
    $region31: #{tpu_custom_call.1} parent=1 // pred_check_branch
      %294 = sbr.rel (0) target = $region33
    $region32: #{tpu_custom_call.1} parent=1 // pred_region
      %s296 = ssub.s32 16, 16
      %297 = vsyncadd [#allocation4], %s296
      %s299 = sshll.u32 [#allocation3], 4
      %s300 = int_to_ptr.vmem [resolvable:$true] %s299
      %302 = dma.vmem_to_hbm [thread:$0]  %s300, 16, %s7, [#allocation4]
    $region33: #{tpu_custom_call.1} parent=1 // pred_fallthru
      _
    // Predicated region
    $region34: #{tpu_custom_call.1} parent=1 // pred_check
      _
    $region35: #{tpu_custom_call.1} parent=1 // pred_check_branch
      %304 = sbr.rel (0) target = $region37
    $region36: #{tpu_custom_call.1} parent=1 // pred_region
      %305 = dma.done [#allocation4], 16
    $region37: #{tpu_custom_call.1} parent=1 // pred_fallthru
      _
    %306 = vsyncpa [#allocation4], 1

</llo_original>
